<compile_context>
chip_gen: v6e
topology: v6e:2x2x1
jax: 0.10.0
libtpu: 0.0.40
codegen_flags: <defaults>
</compile_context>

<pallas_src>
import functools

import jax
import jax.numpy as jnp
from jax.experimental import pallas as pl
from jax.experimental.pallas import tpu as pltpu

_MIB = 1024 * 1024


# ---------------------------------------------------------------------------
# Math helpers
# ---------------------------------------------------------------------------

def _gelu_tanh(x):
    # nn.GELU(approximate='tanh'):
    #   0.5 * x * (1 + tanh(sqrt(2/pi) * (x + 0.044715 * x**3)))
    c = 0.7978845608028654  # sqrt(2/pi)
    return 0.5 * x * (1.0 + jnp.tanh(c * (x + 0.044715 * x * x * x)))


def _round_up(x, m):
    return ((x + m - 1) // m) * m


# ---------------------------------------------------------------------------
# Kernels
# ---------------------------------------------------------------------------

def _mlp_kernel_resident(x_ref, wfc_ref, bfc_ref, wproj_ref, bproj_ref, o_ref):
    """grid = (num_m,).  Weights fully VMEM-resident; no accumulator scratch."""
    x = x_ref[...]                                              # [tm, C] native dtype
    # c_fc: MXU in input dtype, f32 accumulation.
    h = jnp.dot(x, wfc_ref[...], preferred_element_type=jnp.float32)
    h = _gelu_tanh(h + bfc_ref[...].astype(jnp.float32))        # f32 on VPU/EUP
    # c_proj: feed MXU in input dtype, f32 accumulation, write out directly.
    y = jnp.dot(h.astype(x.dtype), wproj_ref[...],
                preferred_element_type=jnp.float32)
    o_ref[...] = (y + bproj_ref[...].astype(jnp.float32)).astype(o_ref.dtype)


def _mlp_kernel_htiled(x_ref, wfc_ref, bfc_ref, wproj_ref, bproj_ref, o_ref,
                       acc_ref):
    """grid = (num_m, num_h).  H axis is a reduction into the f32 acc scratch."""
    k = pl.program_id(1)

    @pl.when(k == 0)
    def _init():
        acc_ref[...] = jnp.zeros_like(acc_ref)

    x = x_ref[...]                                              # [tm, C]
    h = jnp.dot(x, wfc_ref[...], preferred_element_type=jnp.float32)
    h = _gelu_tanh(h + bfc_ref[...].astype(jnp.float32))
    acc_ref[...] += jnp.dot(h.astype(x.dtype), wproj_ref[...],
                            preferred_element_type=jnp.float32)

    @pl.when(k == pl.num_programs(1) - 1)
    def _finalize():
        y = acc_ref[...] + bproj_ref[...].astype(jnp.float32)
        o_ref[...] = y.astype(o_ref.dtype)


# ---------------------------------------------------------------------------
# One-time (load-time) parameter preparation
# ---------------------------------------------------------------------------

def prepare_mlp_params(w_fc, b_fc, w_proj, b_proj, dtype=None):
    """Transpose PyTorch (out, in) weights to (in, out) layout and optionally
    cast (e.g. to bf16 for inference).  Call once at load time, never per
    forward."""
    if dtype is None:
        dtype = w_fc.dtype
    wfc_t = jnp.asarray(w_fc, dtype).T              # [C, 4C]
    wproj_t = jnp.asarray(w_proj, dtype).T          # [4C, C]
    bfc = jnp.asarray(b_fc, dtype).reshape(1, -1)   # [1, 4C]
    bproj = jnp.asarray(b_proj, dtype).reshape(1, -1)  # [1, C]
    return wfc_t, bfc, wproj_t, bproj


# ---------------------------------------------------------------------------
# VMEM budgeting (generation-aware)
# ---------------------------------------------------------------------------

def _vmem_cap_bytes():
    """~0.85x of the chip's VMEM capacity (128 MiB on v5e/v6e, 64 MiB/TC on
    v7x).  Falls back to a conservative 64 MiB if the query is unavailable."""
    try:
        cap = int(pltpu.get_tpu_info().vmem_capacity_bytes)
    except Exception:
        cap = 64 * _MIB
    return int(cap * 0.85)


def _footprint_bytes(tm, C, th, num_h, x_bytes, w_bytes, o_bytes):
    """Estimated VMEM working set for one configuration."""
    wbuf = 1 if num_h == 1 else 2          # resident weights are single-buffered
    est = (
        2 * tm * C * x_bytes                        # double-buffered x tiles
        + 2 * tm * C * o_bytes                      # double-buffered out tiles
        + wbuf * (C * th + th * C + th) * w_bytes   # W_fc / W_proj / b_fc slices
        + C * w_bytes                               # b_proj (single-buffered)
        + (tm * C * 4 if num_h > 1 else 0)          # f32 accumulator scratch
        + 2 * tm * th * 4                           # f32 [tm, th] intermediate + temps
    )
    return int(est * 1.25) + (2 << 20)              # compiler-scratch headroom


def _spec(shape, index_map, buffers=None):
    """BlockSpec helper: request an explicit buffer count (e.g. 1 for
    constant-index operands) when the installed JAX supports pipeline_mode."""
    if buffers is not None and hasattr(pl, "Buffered"):
        try:
            return pl.BlockSpec(shape, index_map,
                                pipeline_mode=pl.Buffered(buffers))
        except TypeError:
            pass
    return pl.BlockSpec(shape, index_map)


# ---------------------------------------------------------------------------
# Forward
# ---------------------------------------------------------------------------

@functools.partial(jax.jit, static_argnames=("tm", "block_h"))
def mlp_forward(x, wfc_t, bfc, wproj_t, bproj, *, tm=256, block_h="auto"):
    """x: [B, T, C]; wfc_t: [C, 4C]; bfc: [1, 4C]; wproj_t: [4C, C]; bproj: [1, C].

    tm:      target rows per M tile (multiple of 256 recommended on v6e/v7x).
    block_h: "auto" (default) keeps weights fully resident when they fit in
             VMEM and only H-tiles when necessary; None forces resident; an
             int forces that H tile (must divide 4C and be a multiple of 128).
    """
    B, T, C = x.shape
    H = wfc_t.shape[1]  # 4*C
    M = B * T
    x2 = x.reshape(M, C)

    x_bytes = jnp.dtype(x.dtype).itemsize
    w_bytes = jnp.dtype(wfc_t.dtype).itemsize
    o_bytes = x_bytes

    # --- M tiling.  16-row multiples for sub-32-bit dtypes (sublane packing),
    # 8 for f32.  No HBM pad copy: the grid uses cdiv and the ragged last M
    # block relies on Pallas boundary handling (OOB reads are don't-care rows,
    # OOB writes are dropped).
    mult = 8 if x_bytes >= 4 else 16
    tm_eff = _round_up(min(tm, _round_up(M, mult)), mult)
    num_m = pl.cdiv(M, tm_eff)
    if num_m < 2 and M >= 2 * mult:
        # Ensure >= 2 M tiles so the "parallel" axis can shard across both
        # v7x TensorCores even for small batches.
        tm_eff = _round_up(pl.cdiv(M, 2), mult)
        num_m = pl.cdiv(M, tm_eff)

    cap = _vmem_cap_bytes()

    # --- H tiling policy: prefer fully-resident weights (one-time HBM fetch,
    # MXU-bound); H-tile only when the resident footprint exceeds the budget.
    if block_h == "auto":
        if _footprint_bytes(tm_eff, C, H, 1, x_bytes, w_bytes, o_bytes) <= cap:
            th = H
        else:
            cands = [t for t in range(H - 128, 127, -128) if H % t == 0]
            th = None
            for t in cands:
                if _footprint_bytes(tm_eff, C, t, H // t,
                                    x_bytes, w_bytes, o_bytes) <= cap:
                    th = t
                    break
            if th is None:
                th = cands[-1] if cands else H
    elif block_h is None:
        th = H
    else:
        th = min(block_h, H)
    assert H % th == 0, "block_h must divide 4*n_embd"
    assert th == H or th % 128 == 0, "block_h must be a multiple of 128"
    num_h = H // th

    vmem_limit = min(
        max(_footprint_bytes(tm_eff, C, th, num_h, x_bytes, w_bytes, o_bytes),
            32 * _MIB),
        cap,
    )

    # Advisory cost model for XLA scheduling around the custom call.
    weight_bytes = (C * H + H * C + H + C) * w_bytes
    if num_h > 1:
        weight_bytes *= num_m  # weights re-streamed per M tile when H-tiled
    cost = pl.CostEstimate(
        flops=4 * M * C * H,
        transcendentals=M * H,
        bytes_accessed=int(M * C * x_bytes + M * C * o_bytes + weight_bytes),
    )

    if num_h == 1:
        # Resident-weight fast path: 1-D grid over M, single-buffered weights,
        # no accumulator scratch.
        out = pl.pallas_call(
            _mlp_kernel_resident,
            out_shape=jax.ShapeDtypeStruct((M, C), x.dtype),
            grid=(num_m,),
            in_specs=[
                pl.BlockSpec((tm_eff, C), lambda i: (i, 0)),   # x tile (2 bufs)
                _spec((C, H), lambda i: (0, 0), buffers=1),    # W_fc^T resident
                _spec((1, H), lambda i: (0, 0), buffers=1),    # b_fc resident
                _spec((H, C), lambda i: (0, 0), buffers=1),    # W_proj^T resident
                _spec((1, C), lambda i: (0, 0), buffers=1),    # b_proj resident
            ],
            out_specs=pl.BlockSpec((tm_eff, C), lambda i: (i, 0)),
            compiler_params=pltpu.CompilerParams(
                dimension_semantics=("parallel",),
                vmem_limit_bytes=vmem_limit,
            ),
            cost_estimate=cost,
        )(x2, wfc_t, bfc, wproj_t, bproj)
    else:
        # H-tiled fallback (weights too large for VMEM): reduction over the
        # 4C axis into an f32 accumulator.
        out = pl.pallas_call(
            _mlp_kernel_htiled,
            out_shape=jax.ShapeDtypeStruct((M, C), x.dtype),
            grid=(num_m, num_h),
            in_specs=[
                pl.BlockSpec((tm_eff, C), lambda i, k: (i, 0)),  # x tile
                pl.BlockSpec((C, th), lambda i, k: (0, k)),      # W_fc^T slice
                pl.BlockSpec((1, th), lambda i, k: (0, k)),      # b_fc slice
                pl.BlockSpec((th, C), lambda i, k: (k, 0)),      # W_proj^T slice
                _spec((1, C), lambda i, k: (0, 0), buffers=1),   # b_proj
            ],
            out_specs=pl.BlockSpec((tm_eff, C), lambda i, k: (i, 0)),
            scratch_shapes=[pltpu.VMEM((tm_eff, C), jnp.float32)],
            compiler_params=pltpu.CompilerParams(
                dimension_semantics=("parallel", "arbitrary"),
                vmem_limit_bytes=vmem_limit,
            ),
            cost_estimate=cost,
        )(x2, wfc_t, bfc, wproj_t, bproj)

    return out.reshape(B, T, C)


# ---------------------------------------------------------------------------
# Reference + self-test
# ---------------------------------------------------------------------------

def reference_mlp(x, w_fc, b_fc, w_proj, b_proj):
    h = jnp.einsum("btc,hc->bth", x, w_fc) + b_fc
    h = _gelu_tanh(h)
    return jnp.einsum("bth,ch->btc", h, w_proj) + b_proj


if __name__ == "__main__":
    key = jax.random.PRNGKey(0)

    def run_case(B, T, C, block_h, dtype, atol, rtol):
        H = 4 * C
        kx, kw1, kb1, kw2, kb2 = jax.random.split(
            jax.random.fold_in(key, 1000 * C + 10 * T + B), 5)
        x = jax.random.normal(kx, (B, T, C), dtype=jnp.float32)
        # Deterministic synthetic params (NoInitLinear skips torch init anyway).
        w_fc = jax.random.normal(kw1, (H, C), dtype=jnp.float32) * 0.02
        b_fc = jax.random.normal(kb1, (H,), dtype=jnp.float32) * 0.02
        w_proj = jax.random.normal(kw2, (C, H), dtype=jnp.float32) * 0.02
        b_proj = jax.random.normal(kb2, (C,), dtype=jnp.float32) * 0.02

        # Load-time prep (transpose + optional bf16 cast), never per forward.
        params = prepare_mlp_params(w_fc, b_fc, w_proj, b_proj, dtype=dtype)
        x_in = x.astype(dtype)

        y = mlp_forward(x_in, *params, tm=256, block_h=block_h)
        y = jax.block_until_ready(y)
        assert y.shape == (B, T, C) and y.dtype == jnp.dtype(dtype)

        # Reference computed in f32 from the same (possibly bf16-rounded) values.
        y_ref = reference_mlp(
            x_in.astype(jnp.float32),
            jnp.asarray(w_fc, dtype).astype(jnp.float32),
            jnp.asarray(b_fc, dtype).astype(jnp.float32),
            jnp.asarray(w_proj, dtype).astype(jnp.float32),
            jnp.asarray(b_proj, dtype).astype(jnp.float32),
        )
        assert jnp.allclose(y.astype(jnp.float32), y_ref, atol=atol, rtol=rtol), (
            f"mismatch vs reference (B={B}, T={T}, C={C}, block_h={block_h}, "
            f"dtype={dtype})"
        )

    # Case 1: toy config (n_embd=32), auto policy -> weights fully resident,
    # M=16 split into 2 tiles so the parallel axis can use both v7x TCs.
    run_case(B=2, T=8, C=32, block_h="auto", dtype=jnp.float32,
             atol=1e-5, rtol=1e-5)

    # Case 2: ragged M (M=18, no pad copy) + explicit H-tiling (H=256 split
    # into two 128-wide slices) exercising the accumulator kernel.
    run_case(B=2, T=9, C=64, block_h=128, dtype=jnp.float32,
             atol=1e-5, rtol=1e-5)

    # Case 3: bf16 activations + weights (the production inference fast path).
    run_case(B=2, T=8, C=64, block_h="auto", dtype=jnp.bfloat16,
             atol=2e-2, rtol=2e-2)

    print("KERNEL_OK")
</pallas_src>

<mosaic_0001>
module attributes {stable_mosaic.version = 11 : i64} {
  func.func @_mlp_kernel_resident(%arg0: i32, %arg1: memref<8x32xf32, #tpu.memory_space<vmem>>, %arg2: memref<32x128xf32, #tpu.memory_space<vmem>>, %arg3: memref<1x128xf32, #tpu.memory_space<vmem>>, %arg4: memref<128x32xf32, #tpu.memory_space<vmem>>, %arg5: memref<1x32xf32, #tpu.memory_space<vmem>>, %arg6: memref<8x32xf32, #tpu.memory_space<vmem>>) attributes {dimension_semantics = [#tpu.dimension_semantics<parallel>], iteration_bounds = array<i64: 2>, scalar_prefetch = 0 : i64, scratch_operands = 0 : i64, tpu.core_type = #tpu.core_type<tc>, window_params = [{transform_indices = @transform_0, window_bounds = array<i64: 8, 32>}, {pipeline_mode = #tpu.pipeline_mode<synchronous>, transform_indices = @transform_1, window_bounds = array<i64: 32, 128>}, {pipeline_mode = #tpu.pipeline_mode<synchronous>, transform_indices = @transform_2, window_bounds = array<i64: 1, 128>}, {pipeline_mode = #tpu.pipeline_mode<synchronous>, transform_indices = @transform_3, window_bounds = array<i64: 128, 32>}, {pipeline_mode = #tpu.pipeline_mode<synchronous>, transform_indices = @transform_4, window_bounds = array<i64: 1, 32>}, {transform_indices = @transform_5, window_bounds = array<i64: 8, 32>}]} {
    %c0 = arith.constant 0 : index
    %c0_0 = arith.constant 0 : index
    %0 = vector.load %arg1[%c0, %c0_0] : memref<8x32xf32, #tpu.memory_space<vmem>>, vector<8x32xf32>
    %c0_1 = arith.constant 0 : index
    %c0_2 = arith.constant 0 : index
    %1 = vector.load %arg2[%c0_1, %c0_2] : memref<32x128xf32, #tpu.memory_space<vmem>>, vector<32x128xf32>
    %cst = arith.constant dense<0.000000e+00> : vector<8x128xf32>
    %2 = tpu.matmul %0, %1, %cst {dimension_numbers = #tpu.dot_dimension_numbers<[1], [0], [0], [1], [0, 0, 1, 1], [], []>} : vector<8x32xf32>, vector<32x128xf32>, vector<8x128xf32> -> vector<8x128xf32>
    %c0_3 = arith.constant 0 : index
    %c0_4 = arith.constant 0 : index
    %3 = vector.load %arg3[%c0_3, %c0_4] : memref<1x128xf32, #tpu.memory_space<vmem>>, vector<1x128xf32>
    %4 = vector.broadcast %3 : vector<1x128xf32> to vector<8x128xf32>
    %5 = arith.addf %2, %4 : vector<8x128xf32>
    %cst_5 = arith.constant 5.000000e-01 : f32
    %6 = vector.broadcast %cst_5 : f32 to vector<8x128xf32>
    %7 = arith.mulf %6, %5 : vector<8x128xf32>
    %cst_6 = arith.constant 4.471500e-02 : f32
    %8 = vector.broadcast %cst_6 : f32 to vector<8x128xf32>
    %9 = arith.mulf %8, %5 : vector<8x128xf32>
    %10 = arith.mulf %9, %5 : vector<8x128xf32>
    %11 = arith.mulf %10, %5 : vector<8x128xf32>
    %12 = arith.addf %5, %11 : vector<8x128xf32>
    %cst_7 = arith.constant 0.797884583 : f32
    %13 = vector.broadcast %cst_7 : f32 to vector<8x128xf32>
    %14 = arith.mulf %13, %12 : vector<8x128xf32>
    %15 = math.tanh %14 : vector<8x128xf32>
    %cst_8 = arith.constant 1.000000e+00 : f32
    %16 = vector.broadcast %cst_8 : f32 to vector<8x128xf32>
    %17 = arith.addf %16, %15 : vector<8x128xf32>
    %18 = arith.mulf %7, %17 : vector<8x128xf32>
    %c0_9 = arith.constant 0 : index
    %c0_10 = arith.constant 0 : index
    %19 = vector.load %arg4[%c0_9, %c0_10] : memref<128x32xf32, #tpu.memory_space<vmem>>, vector<128x32xf32>
    %cst_11 = arith.constant dense<0.000000e+00> : vector<8x32xf32>
    %20 = tpu.matmul %18, %19, %cst_11 {dimension_numbers = #tpu.dot_dimension_numbers<[1], [0], [0], [1], [0, 0, 1, 1], [], []>} : vector<8x128xf32>, vector<128x32xf32>, vector<8x32xf32> -> vector<8x32xf32>
    %c0_12 = arith.constant 0 : index
    %c0_13 = arith.constant 0 : index
    %21 = vector.load %arg5[%c0_12, %c0_13] : memref<1x32xf32, #tpu.memory_space<vmem>>, vector<1x32xf32>
    %22 = vector.broadcast %21 : vector<1x32xf32> to vector<8x32xf32>
    %23 = arith.addf %20, %22 : vector<8x32xf32>
    %c0_14 = arith.constant 0 : index
    %c0_15 = arith.constant 0 : index
    %24 = vector.load %arg6[%c0_14, %c0_15] : memref<8x32xf32, #tpu.memory_space<vmem>>, vector<8x32xf32>
    tpu.vector_store %arg6[%c0_14, %c0_15], %23 {strides = array<i32>} : memref<8x32xf32, #tpu.memory_space<vmem>>, vector<8x32xf32>,
    return
  }
  func.func @transform_0(%arg0: i32) -> (i32, i32) {
    %c0_i32 = arith.constant 0 : i32
    %c0_i32_0 = arith.constant 0 : i32
    return %arg0, %c0_i32 : i32, i32
  }
  func.func @transform_1(%arg0: i32) -> (i32, i32) {
    %c0_i32 = arith.constant 0 : i32
    %c0_i32_0 = arith.constant 0 : i32
    %c0_i32_1 = arith.constant 0 : i32
    return %c0_i32, %c0_i32_0 : i32, i32
  }
  func.func @transform_2(%arg0: i32) -> (i32, i32) {
    %c0_i32 = arith.constant 0 : i32
    %c0_i32_0 = arith.constant 0 : i32
    %c0_i32_1 = arith.constant 0 : i32
    return %c0_i32, %c0_i32_0 : i32, i32
  }
  func.func @transform_3(%arg0: i32) -> (i32, i32) {
    %c0_i32 = arith.constant 0 : i32
    %c0_i32_0 = arith.constant 0 : i32
    %c0_i32_1 = arith.constant 0 : i32
    return %c0_i32, %c0_i32_0 : i32, i32
  }
  func.func @transform_4(%arg0: i32) -> (i32, i32) {
    %c0_i32 = arith.constant 0 : i32
    %c0_i32_0 = arith.constant 0 : i32
    %c0_i32_1 = arith.constant 0 : i32
    return %c0_i32, %c0_i32_0 : i32, i32
  }
  func.func @transform_5(%arg0: i32) -> (i32, i32) {
    %c0_i32 = arith.constant 0 : i32
    %c0_i32_0 = arith.constant 0 : i32
    return %arg0, %c0_i32 : i32, i32
  }
}

</mosaic_0001>

<llo_original>
// kernel: mlp_forward.1
$region0: #{mlp_forward.1}
  #allocation0 [shape = 'u32[]', space=smem, size = 0x4, offset = 0x4, fixed_abs, tag = 'smem constant byte address 0x4 - core index']
  #allocation1 [shape = 'u32[144,128]{1,0:T(1,128)}', space=vmem, size = 0x12000, scoped, tag = 'internal scratch']
  %s0 = inlined_call_operand.vmem [shape: f32[16,32], index: 0, kind: input, shape index: {}]
  %s1 = inlined_call_operand.vmem [shape: f32[32,128], index: 1, kind: input, shape index: {}]
  %s2 = inlined_call_operand.vmem [shape: f32[1,128], index: 2, kind: input, shape index: {}]
  %s3 = inlined_call_operand.vmem [shape: f32[128,32], index: 3, kind: input, shape index: {}]
  %s4 = inlined_call_operand.vmem [shape: f32[1,32], index: 4, kind: input, shape index: {}]
  %s5 = inlined_call_operand.hbm [shape: f32[16,32], index: 5, kind: output, shape index: {}]
  %s6 = sld [smem:[#allocation0]]
  $region53: #{mlp_forward.1} parent=0
    _
  %s8 = ssub.s32 1, %s6
  %s9 = scalar_select 0, %s8, %s6
  $region1: #{mlp_forward.1} parent=0
    #allocation2 [shape = 'u8[8192]{0}', space=vmem, size = 0x2000, scoped, tag = 'output window, operand 0']
    #allocation3 [shape = 's32[2]{0}', space=sflag, size = 0x8, scoped, tag = 'scoped memory for mlp_forward.1']
    %10 = vsyncpa [#allocation3], 0
    %s11 = scalar_lea.sflag [#allocation3], 1
    %12 = vsyncpa %s11, 0
    loop: start=0, step=1, limit=4
    $region2: #{mlp_forward.1} parent=1 // loop_pre_header
      _
    $region3: #{mlp_forward.1} parent=1 // loop_header
      %s14 = sphi 0, %s18
      %p15 = scmp.ge.s32.totalorder %s14, 4
      %s24 = sphi 0, %s26
      %s27 = sphi 0, %s24
      %s28 = sphi 0, %s27
      %s44 = sphi 0, %s28
      %s48 = sphi 0, %s48
      %s50 = sphi 0, %s48
      %s51 = sphi 0, %s50
      %s65 = sphi 0, %s51
      %s69 = sphi 0, %s69
      %s71 = sphi 0, %s69
      %s72 = sphi 0, %s71
      %s86 = sphi 0, %s72
      %s90 = sphi 0, %s90
      %s92 = sphi 0, %s90
      %s93 = sphi 0, %s92
      %s107 = sphi 0, %s93
      %s111 = sphi 0, %s111
      %s113 = sphi 0, %s111
      %s114 = sphi 0, %s113
      %s128 = sphi 0, %s114
      %s134 = sphi 0, %s136
      %s137 = sphi 0, %s134
      %s138 = sphi 0, %s137
      %s154 = sphi 0, %s138
    $region4: #{mlp_forward.1} parent=1 // loop_header_branch
      %17 = sbr.rel (%p15) target = $region8
    $region5: #{mlp_forward.1} parent=1 // loop_body
      %s19 = ssub.s32 %s14, 1
      %s20 = ssub.s32 %s14, 2
      %s21 = sadd.s32 %s14, 1
      %s22 = ssub.s32 %s14, %s21
      %p23 = scmp.eq.s32.totalorder %s22, 0
      %s25 = sadd.s32 %s24, 1
      %s26 = scalar_select %p23, %s24, %s25
      %p29 = pneg %p23
      %p30 = scmp.eq.s32.totalorder %s14, 1
      %p31 = por %p29, %p30
      %p32 = scmp.ne.s32.totalorder %s24, %s27
      %p33 = scmp.eq.s32.totalorder %s14, 0
      %p34 = por %p32, %p33
      %p35 = scmp.ne.s32.totalorder %s24, %s27
      %p36 = scmp.eq.s32.totalorder %s19, 1
      %p37 = por %p35, %p36
      %p38 = scmp.ne.s32.totalorder %s27, %s28
      %p39 = scmp.eq.s32.totalorder %s19, 0
      %p40 = por %p38, %p39
      %p41 = scmp.ne.s32.totalorder %s27, %s28
      %p42 = scmp.eq.s32.totalorder %s20, 1
      %p43 = por %p41, %p42
      %p45 = scmp.ne.s32.totalorder %s28, %s44
      %p46 = scmp.eq.s32.totalorder %s20, 0
      %p47 = por %p45, %p46
      %s49 = sadd.s32 %s48, 1
      %p52 = scmp.eq.s32.totalorder %s14, 1
      %p53 = scmp.ne.s32.totalorder %s48, %s50
      %p54 = scmp.eq.s32.totalorder %s14, 0
      %p55 = por %p53, %p54
      %p56 = scmp.ne.s32.totalorder %s48, %s50
      %p57 = scmp.eq.s32.totalorder %s19, 1
      %p58 = por %p56, %p57
      %p59 = scmp.ne.s32.totalorder %s50, %s51
      %p60 = scmp.eq.s32.totalorder %s19, 0
      %p61 = por %p59, %p60
      %p62 = scmp.ne.s32.totalorder %s50, %s51
      %p63 = scmp.eq.s32.totalorder %s20, 1
      %p64 = por %p62, %p63
      %p66 = scmp.ne.s32.totalorder %s51, %s65
      %p67 = scmp.eq.s32.totalorder %s20, 0
      %p68 = por %p66, %p67
      %s70 = sadd.s32 %s69, 1
      %p73 = scmp.eq.s32.totalorder %s14, 1
      %p74 = scmp.ne.s32.totalorder %s69, %s71
      %p75 = scmp.eq.s32.totalorder %s14, 0
      %p76 = por %p74, %p75
      %p77 = scmp.ne.s32.totalorder %s69, %s71
      %p78 = scmp.eq.s32.totalorder %s19, 1
      %p79 = por %p77, %p78
      %p80 = scmp.ne.s32.totalorder %s71, %s72
      %p81 = scmp.eq.s32.totalorder %s19, 0
      %p82 = por %p80, %p81
      %p83 = scmp.ne.s32.totalorder %s71, %s72
      %p84 = scmp.eq.s32.totalorder %s20, 1
      %p85 = por %p83, %p84
      %p87 = scmp.ne.s32.totalorder %s72, %s86
      %p88 = scmp.eq.s32.totalorder %s20, 0
      %p89 = por %p87, %p88
      %s91 = sadd.s32 %s90, 1
      %p94 = scmp.eq.s32.totalorder %s14, 1
      %p95 = scmp.ne.s32.totalorder %s90, %s92
      %p96 = scmp.eq.s32.totalorder %s14, 0
      %p97 = por %p95, %p96
      %p98 = scmp.ne.s32.totalorder %s90, %s92
      %p99 = scmp.eq.s32.totalorder %s19, 1
      %p100 = por %p98, %p99
      %p101 = scmp.ne.s32.totalorder %s92, %s93
      %p102 = scmp.eq.s32.totalorder %s19, 0
      %p103 = por %p101, %p102
      %p104 = scmp.ne.s32.totalorder %s92, %s93
      %p105 = scmp.eq.s32.totalorder %s20, 1
      %p106 = por %p104, %p105
      %p108 = scmp.ne.s32.totalorder %s93, %s107
      %p109 = scmp.eq.s32.totalorder %s20, 0
      %p110 = por %p108, %p109
      %s112 = sadd.s32 %s111, 1
      %p115 = scmp.eq.s32.totalorder %s14, 1
      %p116 = scmp.ne.s32.totalorder %s111, %s113
      %p117 = scmp.eq.s32.totalorder %s14, 0
      %p118 = por %p116, %p117
      %p119 = scmp.ne.s32.totalorder %s111, %s113
      %p120 = scmp.eq.s32.totalorder %s19, 1
      %p121 = por %p119, %p120
      %p122 = scmp.ne.s32.totalorder %s113, %s114
      %p123 = scmp.eq.s32.totalorder %s19, 0
      %p124 = por %p122, %p123
      %p125 = scmp.ne.s32.totalorder %s113, %s114
      %p126 = scmp.eq.s32.totalorder %s20, 1
      %p127 = por %p125, %p126
      %p129 = scmp.ne.s32.totalorder %s114, %s128
      %p130 = scmp.eq.s32.totalorder %s20, 0
      %p131 = por %p129, %p130
      %s132 = ssub.s32 %s14, %s21
      %p133 = scmp.eq.s32.totalorder %s132, 0
      %s135 = sadd.s32 %s134, 1
      %s136 = scalar_select %p133, %s134, %s135
      %p139 = pneg %p133
      %p140 = scmp.eq.s32.totalorder %s14, 1
      %p141 = por %p139, %p140
      %p142 = scmp.ne.s32.totalorder %s134, %s137
      %p143 = scmp.eq.s32.totalorder %s14, 0
      %p144 = por %p142, %p143
      %p145 = scmp.ne.s32.totalorder %s134, %s137
      %p146 = scmp.eq.s32.totalorder %s19, 1
      %p147 = por %p145, %p146
      %p148 = scmp.ne.s32.totalorder %s137, %s138
      %p149 = scmp.eq.s32.totalorder %s19, 0
      %p150 = por %p148, %p149
      %p151 = scmp.ne.s32.totalorder %s137, %s138
      %p152 = scmp.eq.s32.totalorder %s20, 1
      %p153 = por %p151, %p152
      %p155 = scmp.ne.s32.totalorder %s138, %s154
      %p156 = scmp.eq.s32.totalorder %s20, 0
      %p157 = por %p155, %p156
      %p158 = scmp.le.s32.totalorder 1, %s14
      %p159 = scmp.lt.s32.totalorder %s14, 3
      %p160 = pnand %p158, %p159
      %p161 = pneg %p160
      // Predicated region
      $region9: #{mlp_forward.1} parent=5 // pred_check
        _
      $region10: #{mlp_forward.1} parent=5 // pred_check_branch
        %163 = sbr.rel (%p160) target = $region12
      $region11: #{mlp_forward.1} parent=5 // pred_region
        %s164 = ssub.s32 %s14, 1
        // Predicated region
        $region13: #{mlp_forward.1} parent=11 // pred_check
          %p165 = pneg %p61
        $region14: #{mlp_forward.1} parent=11 // pred_check_branch
          %167 = sbr.rel (%p165) target = $region16
        $region15: #{mlp_forward.1} parent=11 // pred_region
          _
        $region16: #{mlp_forward.1} parent=11 // pred_fallthru
          _
        // Predicated region
        $region17: #{mlp_forward.1} parent=11 // pred_check
          %p168 = pneg %p82
        $region18: #{mlp_forward.1} parent=11 // pred_check_branch
          %170 = sbr.rel (%p168) target = $region20
        $region19: #{mlp_forward.1} parent=11 // pred_region
          _
        $region20: #{mlp_forward.1} parent=11 // pred_fallthru
          _
        // Predicated region
        $region21: #{mlp_forward.1} parent=11 // pred_check
          %p171 = pneg %p103
        $region22: #{mlp_forward.1} parent=11 // pred_check_branch
          %173 = sbr.rel (%p171) target = $region24
        $region23: #{mlp_forward.1} parent=11 // pred_region
          _
        $region24: #{mlp_forward.1} parent=11 // pred_fallthru
          _
        // Predicated region
        $region25: #{mlp_forward.1} parent=11 // pred_check
          %p174 = pneg %p124
        $region26: #{mlp_forward.1} parent=11 // pred_check_branch
          %176 = sbr.rel (%p174) target = $region28
        $region27: #{mlp_forward.1} parent=11 // pred_region
          _
        $region28: #{mlp_forward.1} parent=11 // pred_fallthru
          _
      $region12: #{mlp_forward.1} parent=5 // pred_fallthru
        _
      %p177 = scmp.lt.s32.totalorder %s14, 2
      // Predicated region
      $region29: #{mlp_forward.1} parent=5 // pred_check
        %p178 = pneg %p177
      $region30: #{mlp_forward.1} parent=5 // pred_check_branch
        %180 = sbr.rel (%p178) target = $region32
      $region31: #{mlp_forward.1} parent=5 // pred_region
        // Predicated region
        $region33: #{mlp_forward.1} parent=31 // pred_check
          %p181 = pneg %p34
        $region34: #{mlp_forward.1} parent=31 // pred_check_branch
          %183 = sbr.rel (%p181) target = $region36
        $region35: #{mlp_forward.1} parent=31 // pred_region
          %p184 = scmp.lt.s32.totalorder %s14, 1
          %s185 = scalar_select %p184, %s14, 1
          %s186 = smul.addr %s185, 8
          %s187 = scalar_lea.vmem %s0, %s186
        $region36: #{mlp_forward.1} parent=31 // pred_fallthru
          _
      $region32: #{mlp_forward.1} parent=5 // pred_fallthru
        _
      %p188 = scmp.le.s32.totalorder 1, %s14
      %p189 = scmp.lt.s32.totalorder %s14, 3
      %p190 = pnand %p188, %p189
      %p191 = pneg %p190
      // Predicated region
      $region37: #{mlp_forward.1} parent=5 // pred_check
        _
      $region38: #{mlp_forward.1} parent=5 // pred_check_branch
        %193 = sbr.rel (%p190) target = $region40
      $region39: #{mlp_forward.1} parent=5 // pred_region
        %s194 = ssub.s32 %s14, 1
        %p195 = scmp.lt.s32.totalorder %s19, 1
        %s196 = scalar_select %p195, %s19, 1
        %s197 = smul.addr %s196, 8
        %s198 = scalar_lea.vmem %s0, %s197
        %p199 = pneg %p40
        %p200 = pneg %p37
        %p201 = pneg %p61
        %p202 = pneg %p58
        %p203 = pneg %p82
        %p204 = pneg %p79
        %p205 = pneg %p103
        %p206 = pneg %p100
        %p207 = pneg %p124
        %p208 = pneg %p121
        %p209 = pneg %p150
        %p210 = pneg %p147
        %s211 = sand.u32 %s137, 1
        %s212 = scalar_lea.sflag [#allocation3], %s211
        %s213 = sand.u32 %s137, 1
        %s214 = smul.addr %s213, 8
        %s215 = scalar_lea.vmem [#allocation2], %s214
        %p216 = scmp.lt.s32.totalorder %s19, 1
        %s217 = scalar_select %p216, %s19, 1
        %s218 = smul.addr %s217, 8
        %s219 = scalar_lea.vmem %s0, %s218
        %v220 = vld [vmem:[%s219] sm:$0xff]
        %v221 = vld [vmem:[%s1] sm:$0xff]
        %v222 = vld [vmem:[%s1 + $0x8] sm:$0xff]
        %v223 = vld [vmem:[%s1 + $0x10] sm:$0xff]
        %v224 = vld [vmem:[%s1 + $0x18] sm:$0xff]
        %v225 = vld [vmem:[%s2] sm:$0x1]
        %v227 = vlaneseq
        %v228 = vshrl.u32 %v227, 7
        %v229 = vsub.s32 0, %v228
        %v230 = vrot.slane %v225, %v229
        %vm232 = vcmask 261120
        %v234 = vsel %vm232, %v220, 0
        %236 = vmatprep.subr.mxu0 0.0
        %237 = vmatpush1.msra.mxu0 0.0
        %238 = vmatprep.subr.mxu0 0.0
        %239 = vmatpush1.msra.mxu0 0.0
        %240 = vmatprep.subr.mxu0 0.0
        %241 = vmatpush1.msra.mxu0 0.0
        %242 = vmatprep.subr.mxu0 0.0
        %243 = vmatpush1.msra.mxu0 0.0
        %244 = vmatprep.subr.mxu0 0.0
        %245 = vmatpush1.msra.mxu0 0.0
        %246 = vmatprep.subr.mxu0 0.0
        %247 = vmatpush1.msra.mxu0 0.0
        %248 = vmatprep.subr.mxu0 0.0
        %249 = vmatpush1.msra.mxu0 0.0
        %250 = vmatprep.subr.mxu0 0.0
        %251 = vmatpush1.msra.mxu0 0.0
        %252 = vmatprep.subr.mxu0 0.0
        %253 = vmatpush1.msra.mxu0 0.0
        %254 = vmatprep.subr.mxu0 0.0
        %255 = vmatpush1.msra.mxu0 0.0
        %256 = vmatprep.subr.mxu0 0.0
        %257 = vmatpush1.msra.mxu0 0.0
        %258 = vmatprep.subr.mxu0 0.0
        %259 = vmatpush1.msra.mxu0 0.0
        %260 = vmatprep.subr.mxu0 0.0
        %261 = vmatpush1.msra.mxu0 %v224
        %262 = vmatprep.subr.mxu0 0.0
        %263 = vmatpush1.msra.mxu0 %v223
        %264 = vmatprep.subr.mxu0 0.0
        %265 = vmatpush1.msra.mxu0 %v222
        %266 = vmatprep.subr.mxu0 0.0
        %267 = vmatpush1.msra.mxu0 %v221
        %268 = vmatprep.subr.mxu0 0.0
        %269 = vmatpush2.msra.mxu0 0.0
        %270 = vmatprep.subr.mxu0 0.0
        %271 = vmatpush2.msra.mxu0 0.0
        %272 = vmatprep.subr.mxu0 0.0
        %273 = vmatpush2.msra.mxu0 0.0
        %274 = vmatprep.subr.mxu0 0.0
        %275 = vmatpush2.msra.mxu0 0.0
        %276 = vmatprep.subr.mxu0 0.0
        %277 = vmatpush2.msra.mxu0 0.0
        %278 = vmatprep.subr.mxu0 0.0
        %279 = vmatpush2.msra.mxu0 0.0
        %280 = vmatprep.subr.mxu0 0.0
        %281 = vmatpush2.msra.mxu0 0.0
        %282 = vmatprep.subr.mxu0 0.0
        %283 = vmatpush2.msra.mxu0 0.0
        %284 = vmatprep.subr.mxu0 0.0
        %285 = vmatpush2.msra.mxu0 0.0
        %286 = vmatprep.subr.mxu0 0.0
        %287 = vmatpush2.msra.mxu0 0.0
        %288 = vmatprep.subr.mxu0 0.0
        %289 = vmatpush2.msra.mxu0 0.0
        %290 = vmatprep.subr.mxu0 0.0
        %291 = vmatpush2.msra.mxu0 0.0
        %292 = vmatprep.subr.mxu0 0.0
        %293 = vmatpush2.msra.mxu0 0.0
        %294 = vmatprep.subr.mxu0 0.0
        %295 = vmatpush2.msra.mxu0 0.0
        %296 = vmatprep.subr.mxu0 0.0
        %297 = vmatpush2.msra.mxu0 0.0
        %298 = vmatprep.subr.mxu0 0.0
        %299 = vmatpush2.msra.mxu0 0.0
        %300 = vmatprep.mubr.f32.mxu0 0.0
        %301 = vmatmul.mubr.f32.gmra.mxu0 %v234
        %v302 = vpop.f32.mrf.mxu0
        %v303 = vadd.f32 %v230, %v302
        %v304 = vpop.f32.mrf.mxu0
        %305 = vdwg.mxu0
        %v306 = vmul.f32 %v303, 0.5
        %v307 = vmul.f32 %v303, 0.044715
        %v308 = vmul.f32 %v307, %v303
        %v309 = vmul.f32 %v308, %v303
        %v310 = vadd.f32 %v303, %v309
        %v311 = vmul.f32 %v310, 0.7978846
        %v312 = vtanh.pop %v311
        %v313 = vadd.f32 %v312, 1.0
        %v314 = vmul.f32 %v306, %v313
        %v315 = vld [vmem:[%s3] sm:$0xff]
        %v316 = vld [vmem:[%s3 + $0x8] sm:$0xff]
        %v317 = vld [vmem:[%s3 + $0x10] sm:$0xff]
        %v318 = vld [vmem:[%s3 + $0x18] sm:$0xff]
        %v319 = vld [vmem:[%s3 + $0x20] sm:$0xff]
        %v320 = vld [vmem:[%s3 + $0x28] sm:$0xff]
        %v321 = vld [vmem:[%s3 + $0x30] sm:$0xff]
        %v322 = vld [vmem:[%s3 + $0x38] sm:$0xff]
        %v323 = vld [vmem:[%s3 + $0x40] sm:$0xff]
        %v324 = vld [vmem:[%s3 + $0x48] sm:$0xff]
        %v325 = vld [vmem:[%s3 + $0x50] sm:$0xff]
        %v326 = vld [vmem:[%s3 + $0x58] sm:$0xff]
        %v327 = vld [vmem:[%s3 + $0x60] sm:$0xff]
        %v328 = vld [vmem:[%s3 + $0x68] sm:$0xff]
        %v329 = vld [vmem:[%s3 + $0x70] sm:$0xff]
        %v330 = vld [vmem:[%s3 + $0x78] sm:$0xff]
        %v331 = vld [vmem:[%s4] sm:$0x1]
        %v333 = vlaneseq
        %v334 = vshrl.u32 %v333, 7
        %v335 = vsub.s32 0, %v334
        %v336 = vrot.slane %v331, %v335
        %338 = vmatprep.subr.mxu0 0.0
        %339 = vmatpush1.msra.mxu0 %v330
        %340 = vmatprep.subr.mxu0 0.0
        %341 = vmatpush1.msra.mxu0 %v329
        %342 = vmatprep.subr.mxu0 0.0
        %343 = vmatpush1.msra.mxu0 %v328
        %344 = vmatprep.subr.mxu0 0.0
        %345 = vmatpush1.msra.mxu0 %v327
        %346 = vmatprep.subr.mxu0 0.0
        %347 = vmatpush1.msra.mxu0 %v326
        %348 = vmatprep.subr.mxu0 0.0
        %349 = vmatpush1.msra.mxu0 %v325
        %350 = vmatprep.subr.mxu0 0.0
        %351 = vmatpush1.msra.mxu0 %v324
        %352 = vmatprep.subr.mxu0 0.0
        %353 = vmatpush1.msra.mxu0 %v323
        %354 = vmatprep.subr.mxu0 0.0
        %355 = vmatpush1.msra.mxu0 %v322
        %356 = vmatprep.subr.mxu0 0.0
        %357 = vmatpush1.msra.mxu0 %v321
        %358 = vmatprep.subr.mxu0 0.0
        %359 = vmatpush1.msra.mxu0 %v320
        %360 = vmatprep.subr.mxu0 0.0
        %361 = vmatpush1.msra.mxu0 %v319
        %362 = vmatprep.subr.mxu0 0.0
        %363 = vmatpush1.msra.mxu0 %v318
        %364 = vmatprep.subr.mxu0 0.0
        %365 = vmatpush1.msra.mxu0 %v317
        %366 = vmatprep.subr.mxu0 0.0
        %367 = vmatpush1.msra.mxu0 %v316
        %368 = vmatprep.subr.mxu0 0.0
        %369 = vmatpush1.msra.mxu0 %v315
        %370 = vmatprep.subr.mxu0 0.0
        %371 = vmatpush2.msra.mxu0 0.0
        %372 = vmatprep.subr.mxu0 0.0
        %373 = vmatpush2.msra.mxu0 0.0
        %374 = vmatprep.subr.mxu0 0.0
        %375 = vmatpush2.msra.mxu0 0.0
        %376 = vmatprep.subr.mxu0 0.0
        %377 = vmatpush2.msra.mxu0 0.0
        %378 = vmatprep.subr.mxu0 0.0
        %379 = vmatpush2.msra.mxu0 0.0
        %380 = vmatprep.subr.mxu0 0.0
        %381 = vmatpush2.msra.mxu0 0.0
        %382 = vmatprep.subr.mxu0 0.0
        %383 = vmatpush2.msra.mxu0 0.0
        %384 = vmatprep.subr.mxu0 0.0
        %385 = vmatpush2.msra.mxu0 0.0
        %386 = vmatprep.subr.mxu0 0.0
        %387 = vmatpush2.msra.mxu0 0.0
        %388 = vmatprep.subr.mxu0 0.0
        %389 = vmatpush2.msra.mxu0 0.0
        %390 = vmatprep.subr.mxu0 0.0
        %391 = vmatpush2.msra.mxu0 0.0
        %392 = vmatprep.subr.mxu0 0.0
        %393 = vmatpush2.msra.mxu0 0.0
        %394 = vmatprep.subr.mxu0 0.0
        %395 = vmatpush2.msra.mxu0 0.0
        %396 = vmatprep.subr.mxu0 0.0
        %397 = vmatpush2.msra.mxu0 0.0
        %398 = vmatprep.subr.mxu0 0.0
        %399 = vmatpush2.msra.mxu0 0.0
        %400 = vmatprep.subr.mxu0 0.0
        %401 = vmatpush2.msra.mxu0 0.0
        %402 = vmatprep.mubr.f32.mxu0 0.0
        %403 = vmatmul.mubr.f32.gmra.mxu0 %v314
        %v404 = vpop.f32.mrf.mxu0
        %v405 = vadd.f32 %v336, %v404
        %v406 = vpop.f32.mrf.mxu0
        %407 = vdwg.mxu0
        %408 = vst.msk [vmem:[%s215] sm:$0xff] %vm232, %v405
        %s409 = sand.u32 %s137, 1
        %s410 = scalar_lea.sflag [#allocation3], %s409
        %s411 = sand.u32 %s137, 1
        %s412 = smul.addr %s411, 8
        %s413 = scalar_lea.vmem [#allocation2], %s412
        // Predicated region
        $region41: #{mlp_forward.1} parent=39 // pred_check
          %p414 = pneg %p147
        $region42: #{mlp_forward.1} parent=39 // pred_check_branch
          %416 = sbr.rel (%p414) target = $region44
        $region43: #{mlp_forward.1} parent=39 // pred_region
          %s418 = ssub.s32 128, 128
          %419 = vsyncadd %s410, %s418
          %s420 = smul.addr %s19, 128
          %s421 = scalar_lea.hbm %s5, %s420
          %s423 = sshll.u32 %s413, 4
          %s424 = int_to_ptr.vmem [resolvable:$true] %s423
          %426 = dma.vmem_to_hbm [thread:$0]  %s424, 128, %s421, %s410
        $region44: #{mlp_forward.1} parent=39 // pred_fallthru
          _
      $region40: #{mlp_forward.1} parent=5 // pred_fallthru
        _
      %p427 = scmp.le.s32.totalorder 2, %s14
      // Predicated region
      $region45: #{mlp_forward.1} parent=5 // pred_check
        %p428 = pneg %p427
      $region46: #{mlp_forward.1} parent=5 // pred_check_branch
        %430 = sbr.rel (%p428) target = $region48
      $region47: #{mlp_forward.1} parent=5 // pred_region
        %s431 = ssub.s32 %s14, 2
        // Predicated region
        $region49: #{mlp_forward.1} parent=47 // pred_check
          %p432 = pneg %p153
        $region50: #{mlp_forward.1} parent=47 // pred_check_branch
          %434 = sbr.rel (%p432) target = $region52
        $region51: #{mlp_forward.1} parent=47 // pred_region
          %s435 = sand.u32 %s138, 1
          %s436 = scalar_lea.sflag [#allocation3], %s435
          %s437 = sand.u32 %s138, 1
          %s438 = smul.addr %s437, 8
          %s439 = scalar_lea.vmem [#allocation2], %s438
          %440 = dma.done %s436, 128
        $region52: #{mlp_forward.1} parent=47 // pred_fallthru
          _
      $region48: #{mlp_forward.1} parent=5 // pred_fallthru
        _
    $region6: #{mlp_forward.1} parent=1 // loop_footer
      %s18 = sadd.s32 1, %s14
    $region7: #{mlp_forward.1} parent=1 // loop_footer_branch
      %13 = sbr.rel target = $region3
    $region8: #{mlp_forward.1} parent=1 // loop_exit
      _
    %441 = vsyncpa [#allocation3], 1
    %s442 = scalar_lea.sflag [#allocation3], 1
    %443 = vsyncpa %s442, 1

</llo_original>
